<compile_context>
chip_gen: v7x
topology: tpu7x:2x2x1
jax: 0.10.0
libtpu: 0.0.40
codegen_flags: <defaults>
</compile_context>

<pallas_src>
import jax
import jax.numpy as jnp
from jax.experimental import pallas as pl
from jax.experimental.pallas import tpu as pltpu

_NEG_BIG = -1e30  # finite mask sentinel: same softmax result for valid rows, no NaNs
_LANES = 128
_SUBLANES = 8


def _round_up(x, m):
    return (x + m - 1) // m * m


def _style_classifier_kernel(tmax_ref,                        # scalar prefetch (SMEM): [n_batch_tiles] int32
                             lens_ref,                        # (TB, 1) int32  per-row lengths (VMEM)
                             x_ref,                           # (TB, TS, D) bf16
                             w1_ref, b1_ref, w2_ref, b2_ref,  # (D,Hp) bf16, (1,Hp) f32, (1,Hp) f32, (1,1) f32 SMEM
                             wo_ref, bo_ref,                  # (D,NSp) bf16, (1,NSp) f32
                             out_ref,                         # (TB, NSp) f32
                             m_ref, l_ref, acc_ref):          # scratch: (TB,1), (TB,1), (TB,D) f32
    TB, TS, D = x_ref.shape
    Hp = w1_ref.shape[1]

    bt = pl.program_id(0)
    s_step = pl.program_id(1)
    n_s = pl.num_programs(1)
    s0 = s_step * TS

    @pl.when(s_step == 0)
    def _init():
        m_ref[...] = jnp.full_like(m_ref, _NEG_BIG)
        l_ref[...] = jnp.zeros_like(l_ref)
        acc_ref[...] = jnp.zeros_like(acc_ref)

    # Skip sequence tiles that are fully masked for every row of this batch tile
    # (one SMEM scalar read; their softmax contribution is exactly zero).
    live = jnp.logical_or(s_step == 0, s0 < tmax_ref[bt])

    @pl.when(live)
    def _update():
        x = x_ref[...]                                               # (TB, TS, D) bf16

        # --- ContextReps2.w_fn: Linear(D,H) -> ReLU -> Linear(H,1) -----------
        # (TB*TS, D) @ (D, Hp) on the MXU with f32 accumulation; the reshape is
        # layout-preserving (TS is a multiple of 8 sublanes).
        h = jnp.dot(x.reshape(TB * TS, D), w1_ref[...],
                    preferred_element_type=jnp.float32)
        h = jnp.maximum(h + b1_ref[...], 0.0).reshape(TB, TS, Hp)
        # H->1 linear as a lane reduction (w2 stored transposed, zero-padded lanes).
        w = jnp.sum(h * w2_ref[...], axis=-1) + b2_ref[0, 0]         # (TB, TS) f32

        # --- vectorized length mask (finite sentinel, no -inf/NaN) ------------
        pos = s0 + jax.lax.broadcasted_iota(jnp.int32, (TB, TS), 1)
        wm = jnp.where(pos < lens_ref[...], w, _NEG_BIG)             # (TB,1) broadcast

        # --- online (flash-style) masked softmax + weighted pooling ----------
        m_prev = m_ref[...]                                          # (TB, 1)
        m_new = jnp.maximum(m_prev, jnp.max(wm, axis=-1, keepdims=True))
        alpha = jnp.exp(m_prev - m_new)                              # (TB, 1)
        p = jnp.exp(wm - m_new)                                      # (TB, TS)
        l_ref[...] = alpha * l_ref[...] + jnp.sum(p, axis=-1, keepdims=True)
        # VPU weighted sum (broadcast-multiply + sublane reduce), not a q=1 MXU matmul.
        xw = jnp.sum(p[:, :, None] * x.astype(jnp.float32), axis=1)  # (TB, D) f32
        acc_ref[...] = alpha * acc_ref[...] + xw
        m_ref[...] = m_new

    @pl.when(s_step == n_s - 1)
    def _finalize():
        inv_l = pl.reciprocal(l_ref[...], approx=True)               # EUP slot (free)
        vec = acc_ref[...] * inv_l                                   # (TB, D) f32
        logits = jnp.dot(vec.astype(jnp.bfloat16), wo_ref[...],
                         preferred_element_type=jnp.float32) + bo_ref[...]
        out_ref[...] = logits                                        # lane-dense store


def style_classifier_logits(x, src_lengths, params, *, batch_block=8, seq_block=512):
    """x: [B, S, D] f32, src_lengths: [B] int -> logits [B, num_styles] f32.

    seq_block sizes the x tile (bf16): TB * seq_block * D * 2 bytes, double-buffered.
    The default (512) keeps the double-buffered x tile + constant weight blocks well
    under the 32 MiB default scoped VMEM limit, even for v7x's 64 MiB physical VMEM.
    """
    B, S, D = x.shape
    w1, b1 = params["w1"], params["b1"]        # (D, H), (1, H)
    w2, b2 = params["w2"], params["b2"]        # (H, 1), (1, 1)
    wo, bo = params["wo"], params["bo"]        # (D, NS), (1, NS)
    H = w1.shape[1]
    NS = wo.shape[1]

    # Lane-pad feature dims (H, num_styles) to 128; pad B/S to tile multiples.
    Hp = _round_up(H, _LANES)
    NSp = _round_up(NS, _LANES)
    # TB: either the full batch (block == array dim, any size ok) or a multiple of 8
    # so (TB, *) second-minor blocks satisfy the (8, 128) rule.
    TB = B if B <= batch_block else _round_up(batch_block, _SUBLANES)
    Bp = _round_up(B, TB)
    TS = _round_up(min(seq_block, _round_up(S, _SUBLANES)), _SUBLANES)
    Sp = _round_up(S, TS)
    n_bt = Bp // TB

    # Operand prep: bf16 for MXU operands (x, W1, Wo), f32 for biases / w2 (VPU path).
    xp = jnp.zeros((Bp, Sp, D), jnp.bfloat16).at[:B, :S, :].set(x.astype(jnp.bfloat16))
    lens = jnp.zeros((Bp,), jnp.int32).at[:B].set(src_lengths.astype(jnp.int32))
    lens2d = lens.reshape(Bp, 1)
    tile_max = jnp.max(lens.reshape(n_bt, TB), axis=1)            # per-batch-tile max len
    w1p = jnp.zeros((D, Hp), jnp.bfloat16).at[:, :H].set(w1.astype(jnp.bfloat16))
    b1p = jnp.zeros((1, Hp), jnp.float32).at[:, :H].set(b1.reshape(1, H).astype(jnp.float32))
    w2p = jnp.zeros((1, Hp), jnp.float32).at[0, :H].set(w2.reshape(H).astype(jnp.float32))
    b2s = jnp.asarray(b2, jnp.float32).reshape(1, 1)
    wop = jnp.zeros((D, NSp), jnp.bfloat16).at[:, :NS].set(wo.astype(jnp.bfloat16))
    bop = jnp.zeros((1, NSp), jnp.float32).at[:, :NS].set(bo.reshape(1, NS).astype(jnp.float32))

    grid = (n_bt, Sp // TS)

    out = pl.pallas_call(
        _style_classifier_kernel,
        out_shape=jax.ShapeDtypeStruct((Bp, NSp), jnp.float32),
        grid_spec=pltpu.PrefetchScalarGridSpec(
            num_scalar_prefetch=1,                                        # tile-max lens -> SMEM
            grid=grid,
            in_specs=[
                pl.BlockSpec((TB, 1), lambda b, s, T: (b, 0)),            # per-row lengths
                pl.BlockSpec((TB, TS, D), lambda b, s, T: (b, s, 0)),     # x tile
                pl.BlockSpec((D, Hp), lambda b, s, T: (0, 0)),            # W1 (constant block)
                pl.BlockSpec((1, Hp), lambda b, s, T: (0, 0)),            # b1
                pl.BlockSpec((1, Hp), lambda b, s, T: (0, 0)),            # w2^T
                pl.BlockSpec(memory_space=pltpu.MemorySpace.SMEM),        # b2 scalar
                pl.BlockSpec((D, NSp), lambda b, s, T: (0, 0)),           # Wo
                pl.BlockSpec((1, NSp), lambda b, s, T: (0, 0)),           # bo
            ],
            out_specs=pl.BlockSpec((TB, NSp), lambda b, s, T: (b, 0)),    # resident over s
            scratch_shapes=[
                pltpu.VMEM((TB, 1), jnp.float32),   # running max
                pltpu.VMEM((TB, 1), jnp.float32),   # running denom
                pltpu.VMEM((TB, D), jnp.float32),   # running weighted x sum
            ],
        ),
        compiler_params=pltpu.CompilerParams(
            dimension_semantics=("parallel", "arbitrary")),
    )(tile_max, lens2d, xp, w1p, b1p, w2p, b2s, wop, bop)

    return out[:B, :NS]


if __name__ == "__main__":
    # Small shapes consistent with the module: model_dim D, hidden = D//2 + 1 (default).
    B, S, D = 4, 20, 32
    H = D // 2 + 1          # ContextReps2 default hidden_size
    NS = 5                  # num_styles

    key = jax.random.PRNGKey(0)
    ks = jax.random.split(key, 4)

    def linear_params(k, fin, fout):
        k1, k2 = jax.random.split(k)
        w = jax.random.normal(k1, (fin, fout), jnp.float32) / jnp.sqrt(fin)
        b = jax.random.normal(k2, (1, fout), jnp.float32) * 0.01
        return w, b

    w1, b1 = linear_params(ks[0], D, H)       # w_fn[0]
    w2, b2 = linear_params(ks[1], H, 1)       # w_fn[2]
    wo, bo = linear_params(ks[2], D, NS)      # sent_out_layer
    x = jax.random.normal(ks[3], (B, S, D), jnp.float32)
    src_lengths = jnp.array([20, 17, 5, 11], dtype=jnp.int32)

    params = dict(w1=w1, b1=b1, w2=w2, b2=b2, wo=wo, bo=bo)

    # seq_block=8 so the online-softmax accumulation runs over multiple S tiles.
    logits = style_classifier_logits(x, src_lengths, params, seq_block=8)
    logits = jax.block_until_ready(logits)

    # Pure-JAX reference with the same bf16-at-MXU / f32-accumulate precision policy.
    def reference(x, lengths):
        xb = x.astype(jnp.bfloat16)
        h = jnp.dot(xb, w1.astype(jnp.bfloat16),
                    preferred_element_type=jnp.float32) + b1           # (B,S,H)
        h = jnp.maximum(h, 0.0)
        w = (jnp.dot(h, w2) + b2)[..., 0]                              # (B,S)
        mask = jnp.arange(S)[None, :] < lengths[:, None]
        w = jnp.where(mask, w, _NEG_BIG)
        ww = jax.nn.softmax(w, axis=-1)
        vec = jnp.sum(ww[:, :, None] * xb.astype(jnp.float32), axis=1)  # (B,D)
        return jnp.dot(vec.astype(jnp.bfloat16), wo.astype(jnp.bfloat16),
                       preferred_element_type=jnp.float32) + bo

    expected = reference(x, src_lengths)
    assert logits.shape == (B, NS), logits.shape
    assert jnp.allclose(logits, expected, atol=1e-2, rtol=1e-2), (logits, expected)
    print("KERNEL_OK")
</pallas_src>

<mosaic_0001>
module attributes {stable_mosaic.version = 11 : i64} {
  func.func @_style_classifier_kernel(%arg0: i32, %arg1: i32, %arg2: memref<1xi32, #tpu.memory_space<smem>>, %arg3: memref<4x1xi32, #tpu.memory_space<vmem>>, %arg4: memref<4x8x32xbf16, #tpu.memory_space<vmem>>, %arg5: memref<32x128xbf16, #tpu.memory_space<vmem>>, %arg6: memref<1x128xf32, #tpu.memory_space<vmem>>, %arg7: memref<1x128xf32, #tpu.memory_space<vmem>>, %arg8: memref<1x1xf32, #tpu.memory_space<smem>>, %arg9: memref<32x128xbf16, #tpu.memory_space<vmem>>, %arg10: memref<1x128xf32, #tpu.memory_space<vmem>>, %arg11: memref<4x128xf32, #tpu.memory_space<vmem>>, %arg12: memref<4x1xf32, #tpu.memory_space<vmem>>, %arg13: memref<4x1xf32, #tpu.memory_space<vmem>>, %arg14: memref<4x32xf32, #tpu.memory_space<vmem>>) attributes {dimension_semantics = [#tpu.dimension_semantics<parallel>, #tpu.dimension_semantics<arbitrary>], iteration_bounds = array<i64: 1, 3>, scalar_prefetch = 1 : i64, scratch_operands = 3 : i64, tpu.core_type = #tpu.core_type<tc>, window_params = [{transform_indices = @transform_0, window_bounds = array<i64: 4, 1>}, {transform_indices = @transform_1, window_bounds = array<i64: 4, 8, 32>}, {pipeline_mode = #tpu.pipeline_mode<synchronous>, transform_indices = @transform_2, window_bounds = array<i64: 32, 128>}, {pipeline_mode = #tpu.pipeline_mode<synchronous>, transform_indices = @transform_3, window_bounds = array<i64: 1, 128>}, {pipeline_mode = #tpu.pipeline_mode<synchronous>, transform_indices = @transform_4, window_bounds = array<i64: 1, 128>}, {transform_indices = @transform_5, window_bounds = array<i64: 1, 1>}, {pipeline_mode = #tpu.pipeline_mode<synchronous>, transform_indices = @transform_6, window_bounds = array<i64: 32, 128>}, {pipeline_mode = #tpu.pipeline_mode<synchronous>, transform_indices = @transform_7, window_bounds = array<i64: 1, 128>}, {transform_indices = @transform_8, window_bounds = array<i64: 4, 128>}]} {
    %c8_i32 = arith.constant 8 : i32
    %0 = arith.muli %arg1, %c8_i32 : i32
    %c0_i32 = arith.constant 0 : i32
    %1 = arith.cmpi eq, %arg1, %c0_i32 : i32
    %2 = arith.extui %1 : i1 to i32
    %c0_i32_0 = arith.constant 0 : i32
    %3 = arith.cmpi ne, %2, %c0_i32_0 : i32
    scf.if %3 {
      %cst = arith.constant -1.000000e+30 : f32
      %14 = vector.broadcast %cst : f32 to vector<4x1xf32>
      %c0 = arith.constant 0 : index
      %c0_4 = arith.constant 0 : index
      %15 = vector.load %arg12[%c0, %c0_4] : memref<4x1xf32, #tpu.memory_space<vmem>>, vector<4x1xf32>
      tpu.vector_store %arg12[%c0, %c0_4], %14 {strides = array<i32>} : memref<4x1xf32, #tpu.memory_space<vmem>>, vector<4x1xf32>,
      %cst_5 = arith.constant 0.000000e+00 : f32
      %16 = vector.broadcast %cst_5 : f32 to vector<4x1xf32>
      %c0_6 = arith.constant 0 : index
      %c0_7 = arith.constant 0 : index
      %17 = vector.load %arg13[%c0_6, %c0_7] : memref<4x1xf32, #tpu.memory_space<vmem>>, vector<4x1xf32>
      tpu.vector_store %arg13[%c0_6, %c0_7], %16 {strides = array<i32>} : memref<4x1xf32, #tpu.memory_space<vmem>>, vector<4x1xf32>,
      %cst_8 = arith.constant 0.000000e+00 : f32
      %18 = vector.broadcast %cst_8 : f32 to vector<4x32xf32>
      %c0_9 = arith.constant 0 : index
      %c0_10 = arith.constant 0 : index
      %19 = vector.load %arg14[%c0_9, %c0_10] : memref<4x32xf32, #tpu.memory_space<vmem>>, vector<4x32xf32>
      tpu.vector_store %arg14[%c0_9, %c0_10], %18 {strides = array<i32>} : memref<4x32xf32, #tpu.memory_space<vmem>>, vector<4x32xf32>,
    } else {
    }
    %c0_i32_1 = arith.constant 0 : i32
    %4 = arith.cmpi eq, %arg1, %c0_i32_1 : i32
    %5 = arith.index_cast %arg0 : i32 to index
    %6 = memref.load %arg2[%5] : memref<1xi32, #tpu.memory_space<smem>>
    %7 = arith.cmpi slt, %0, %6 : i32
    %8 = arith.ori %4, %7 : i1
    %9 = arith.extui %8 : i1 to i32
    %c0_i32_2 = arith.constant 0 : i32
    %10 = arith.cmpi ne, %9, %c0_i32_2 : i32
    scf.if %10 {
      %c0 = arith.constant 0 : index
      %c0_4 = arith.constant 0 : index
      %c0_5 = arith.constant 0 : index
      %14 = vector.load %arg4[%c0, %c0_4, %c0_5] : memref<4x8x32xbf16, #tpu.memory_space<vmem>>, vector<4x8x32xbf16>
      %15 = vector.shape_cast %14 : vector<4x8x32xbf16> to vector<32x32xbf16>
      %c0_6 = arith.constant 0 : index
      %c0_7 = arith.constant 0 : index
      %16 = vector.load %arg5[%c0_6, %c0_7] : memref<32x128xbf16, #tpu.memory_space<vmem>>, vector<32x128xbf16>
      %cst = arith.constant dense<0.000000e+00> : vector<32x128xf32>
      %17 = tpu.matmul %15, %16, %cst {dimension_numbers = #tpu.dot_dimension_numbers<[1], [0], [0], [1], [0, 0, 1, 1], [], []>} : vector<32x32xbf16>, vector<32x128xbf16>, vector<32x128xf32> -> vector<32x128xf32>
      %c0_8 = arith.constant 0 : index
      %c0_9 = arith.constant 0 : index
      %18 = vector.load %arg6[%c0_8, %c0_9] : memref<1x128xf32, #tpu.memory_space<vmem>>, vector<1x128xf32>
      %19 = vector.broadcast %18 : vector<1x128xf32> to vector<32x128xf32>
      %20 = arith.addf %17, %19 : vector<32x128xf32>
      %cst_10 = arith.constant 0.000000e+00 : f32
      %21 = vector.broadcast %cst_10 : f32 to vector<32x128xf32>
      %22 = arith.maximumf %20, %21 : vector<32x128xf32>
      %23 = vector.shape_cast %22 : vector<32x128xf32> to vector<4x8x128xf32>
      %c0_11 = arith.constant 0 : index
      %c0_12 = arith.constant 0 : index
      %24 = vector.load %arg7[%c0_11, %c0_12] : memref<1x128xf32, #tpu.memory_space<vmem>>, vector<1x128xf32>
      %25 = vector.shape_cast %24 : vector<1x128xf32> to vector<1x1x128xf32>
      %26 = vector.broadcast %25 : vector<1x1x128xf32> to vector<4x8x128xf32>
      %27 = arith.mulf %23, %26 : vector<4x8x128xf32>
      %cst_13 = arith.constant dense<0.000000e+00> : vector<4x8xf32>
      %28 = vector.multi_reduction <add>, %27, %cst_13 [2] : vector<4x8x128xf32> to vector<4x8xf32>
      %c0_14 = arith.constant 0 : index
      %c0_15 = arith.constant 0 : index
      %29 = memref.load %arg8[%c0_14, %c0_15] : memref<1x1xf32, #tpu.memory_space<smem>>
      %30 = vector.broadcast %29 : f32 to vector<4x8xf32>
      %31 = arith.addf %28, %30 : vector<4x8xf32>
      %32 = tpu.iota {dimensions = array<i32: 1>} : vector<4x8xi32>
      %33 = vector.broadcast %0 : i32 to vector<4x8xi32>
      %34 = arith.addi %33, %32 : vector<4x8xi32>
      %c0_16 = arith.constant 0 : index
      %c0_17 = arith.constant 0 : index
      %35 = vector.load %arg3[%c0_16, %c0_17] : memref<4x1xi32, #tpu.memory_space<vmem>>, vector<4x1xi32>
      %36 = vector.broadcast %35 : vector<4x1xi32> to vector<4x8xi32>
      %37 = arith.cmpi slt, %34, %36 : vector<4x8xi32>
      %cst_18 = arith.constant -1.000000e+30 : f32
      %38 = vector.broadcast %cst_18 : f32 to vector<4x8xf32>
      %39 = arith.select %37, %31, %38 : vector<4x8xi1>, vector<4x8xf32>
      %c0_19 = arith.constant 0 : index
      %c0_20 = arith.constant 0 : index
      %40 = vector.load %arg12[%c0_19, %c0_20] : memref<4x1xf32, #tpu.memory_space<vmem>>, vector<4x1xf32>
      %cst_21 = arith.constant dense<0xFF800000> : vector<4xf32>
      %41 = vector.multi_reduction <maximumf>, %39, %cst_21 [1] : vector<4x8xf32> to vector<4xf32>
      %42 = vector.shape_cast %41 : vector<4xf32> to vector<4x1xf32>
      %43 = arith.maximumf %40, %42 : vector<4x1xf32>
      %44 = arith.subf %40, %43 : vector<4x1xf32>
      %45 = math.exp %44 : vector<4x1xf32>
      %46 = vector.broadcast %43 : vector<4x1xf32> to vector<4x8xf32>
      %47 = arith.subf %39, %46 : vector<4x8xf32>
      %48 = math.exp %47 : vector<4x8xf32>
      %c0_22 = arith.constant 0 : index
      %c0_23 = arith.constant 0 : index
      %49 = vector.load %arg13[%c0_22, %c0_23] : memref<4x1xf32, #tpu.memory_space<vmem>>, vector<4x1xf32>
      %50 = arith.mulf %45, %49 : vector<4x1xf32>
      %cst_24 = arith.constant dense<0.000000e+00> : vector<4xf32>
      %51 = vector.multi_reduction <add>, %48, %cst_24 [1] : vector<4x8xf32> to vector<4xf32>
      %52 = vector.shape_cast %51 : vector<4xf32> to vector<4x1xf32>
      %53 = arith.addf %50, %52 : vector<4x1xf32>
      %c0_25 = arith.constant 0 : index
      %c0_26 = arith.constant 0 : index
      %54 = vector.load %arg13[%c0_25, %c0_26] : memref<4x1xf32, #tpu.memory_space<vmem>>, vector<4x1xf32>
      tpu.vector_store %arg13[%c0_25, %c0_26], %53 {strides = array<i32>} : memref<4x1xf32, #tpu.memory_space<vmem>>, vector<4x1xf32>,
      %55 = vector.shape_cast %48 : vector<4x8xf32> to vector<4x8x1xf32>
      %56 = arith.extf %14 : vector<4x8x32xbf16> to vector<4x8x32xf32>
      %57 = vector.broadcast %55 : vector<4x8x1xf32> to vector<4x8x32xf32>
      %58 = arith.mulf %57, %56 : vector<4x8x32xf32>
      %cst_27 = arith.constant dense<0.000000e+00> : vector<4x32xf32>
      %59 = vector.multi_reduction <add>, %58, %cst_27 [1] : vector<4x8x32xf32> to vector<4x32xf32>
      %c0_28 = arith.constant 0 : index
      %c0_29 = arith.constant 0 : index
      %60 = vector.load %arg14[%c0_28, %c0_29] : memref<4x32xf32, #tpu.memory_space<vmem>>, vector<4x32xf32>
      %61 = vector.broadcast %45 : vector<4x1xf32> to vector<4x32xf32>
      %62 = arith.mulf %61, %60 : vector<4x32xf32>
      %63 = arith.addf %62, %59 : vector<4x32xf32>
      %c0_30 = arith.constant 0 : index
      %c0_31 = arith.constant 0 : index
      %64 = vector.load %arg14[%c0_30, %c0_31] : memref<4x32xf32, #tpu.memory_space<vmem>>, vector<4x32xf32>
      tpu.vector_store %arg14[%c0_30, %c0_31], %63 {strides = array<i32>} : memref<4x32xf32, #tpu.memory_space<vmem>>, vector<4x32xf32>,
      %c0_32 = arith.constant 0 : index
      %c0_33 = arith.constant 0 : index
      %65 = vector.load %arg12[%c0_32, %c0_33] : memref<4x1xf32, #tpu.memory_space<vmem>>, vector<4x1xf32>
      tpu.vector_store %arg12[%c0_32, %c0_33], %43 {strides = array<i32>} : memref<4x1xf32, #tpu.memory_space<vmem>>, vector<4x1xf32>,
    } else {
    }
    %c2_i32 = arith.constant 2 : i32
    %11 = arith.cmpi eq, %arg1, %c2_i32 : i32
    %12 = arith.extui %11 : i1 to i32
    %c0_i32_3 = arith.constant 0 : i32
    %13 = arith.cmpi ne, %12, %c0_i32_3 : i32
    scf.if %13 {
      %c0 = arith.constant 0 : index
      %c0_4 = arith.constant 0 : index
      %14 = vector.load %arg13[%c0, %c0_4] : memref<4x1xf32, #tpu.memory_space<vmem>>, vector<4x1xf32>
      %15 = tpu.reciprocal %14 {approx = true} : vector<4x1xf32> -> vector<4x1xf32>
      %c0_5 = arith.constant 0 : index
      %c0_6 = arith.constant 0 : index
      %16 = vector.load %arg14[%c0_5, %c0_6] : memref<4x32xf32, #tpu.memory_space<vmem>>, vector<4x32xf32>
      %17 = vector.broadcast %15 : vector<4x1xf32> to vector<4x32xf32>
      %18 = arith.mulf %16, %17 : vector<4x32xf32>
      %19 = arith.truncf %18 : vector<4x32xf32> to vector<4x32xbf16>
      %c0_7 = arith.constant 0 : index
      %c0_8 = arith.constant 0 : index
      %20 = vector.load %arg9[%c0_7, %c0_8] : memref<32x128xbf16, #tpu.memory_space<vmem>>, vector<32x128xbf16>
      %cst = arith.constant dense<0.000000e+00> : vector<4x128xf32>
      %21 = tpu.matmul %19, %20, %cst {dimension_numbers = #tpu.dot_dimension_numbers<[1], [0], [0], [1], [0, 0, 1, 1], [], []>} : vector<4x32xbf16>, vector<32x128xbf16>, vector<4x128xf32> -> vector<4x128xf32>
      %c0_9 = arith.constant 0 : index
      %c0_10 = arith.constant 0 : index
      %22 = vector.load %arg10[%c0_9, %c0_10] : memref<1x128xf32, #tpu.memory_space<vmem>>, vector<1x128xf32>
      %23 = vector.broadcast %22 : vector<1x128xf32> to vector<4x128xf32>
      %24 = arith.addf %21, %23 : vector<4x128xf32>
      %c0_11 = arith.constant 0 : index
      %c0_12 = arith.constant 0 : index
      %25 = vector.load %arg11[%c0_11, %c0_12] : memref<4x128xf32, #tpu.memory_space<vmem>>, vector<4x128xf32>
      tpu.vector_store %arg11[%c0_11, %c0_12], %24 {strides = array<i32>} : memref<4x128xf32, #tpu.memory_space<vmem>>, vector<4x128xf32>,
    } else {
    }
    return
  }
  func.func @transform_0(%arg0: i32, %arg1: i32, %arg2: memref<1xi32, #tpu.memory_space<smem>>) -> (i32, i32) {
    %c0_i32 = arith.constant 0 : i32
    %c0_i32_0 = arith.constant 0 : i32
    return %arg0, %c0_i32 : i32, i32
  }
  func.func @transform_1(%arg0: i32, %arg1: i32, %arg2: memref<1xi32, #tpu.memory_space<smem>>) -> (i32, i32, i32) {
    %c0_i32 = arith.constant 0 : i32
    %c0_i32_0 = arith.constant 0 : i32
    return %arg0, %arg1, %c0_i32 : i32, i32, i32
  }
  func.func @transform_2(%arg0: i32, %arg1: i32, %arg2: memref<1xi32, #tpu.memory_space<smem>>) -> (i32, i32) {
    %c0_i32 = arith.constant 0 : i32
    %c0_i32_0 = arith.constant 0 : i32
    %c0_i32_1 = arith.constant 0 : i32
    return %c0_i32, %c0_i32_0 : i32, i32
  }
  func.func @transform_3(%arg0: i32, %arg1: i32, %arg2: memref<1xi32, #tpu.memory_space<smem>>) -> (i32, i32) {
    %c0_i32 = arith.constant 0 : i32
    %c0_i32_0 = arith.constant 0 : i32
    %c0_i32_1 = arith.constant 0 : i32
    return %c0_i32, %c0_i32_0 : i32, i32
  }
  func.func @transform_4(%arg0: i32, %arg1: i32, %arg2: memref<1xi32, #tpu.memory_space<smem>>) -> (i32, i32) {
    %c0_i32 = arith.constant 0 : i32
    %c0_i32_0 = arith.constant 0 : i32
    %c0_i32_1 = arith.constant 0 : i32
    return %c0_i32, %c0_i32_0 : i32, i32
  }
  func.func @transform_5(%arg0: i32, %arg1: i32, %arg2: memref<1xi32, #tpu.memory_space<smem>>) -> (i32, i32) {
    %c0_i32 = arith.constant 0 : i32
    %c0_i32_0 = arith.constant 0 : i32
    %c0_i32_1 = arith.constant 0 : i32
    return %c0_i32, %c0_i32_0 : i32, i32
  }
  func.func @transform_6(%arg0: i32, %arg1: i32, %arg2: memref<1xi32, #tpu.memory_space<smem>>) -> (i32, i32) {
    %c0_i32 = arith.constant 0 : i32
    %c0_i32_0 = arith.constant 0 : i32
    %c0_i32_1 = arith.constant 0 : i32
    return %c0_i32, %c0_i32_0 : i32, i32
  }
  func.func @transform_7(%arg0: i32, %arg1: i32, %arg2: memref<1xi32, #tpu.memory_space<smem>>) -> (i32, i32) {
    %c0_i32 = arith.constant 0 : i32
    %c0_i32_0 = arith.constant 0 : i32
    %c0_i32_1 = arith.constant 0 : i32
    return %c0_i32, %c0_i32_0 : i32, i32
  }
  func.func @transform_8(%arg0: i32, %arg1: i32, %arg2: memref<1xi32, #tpu.memory_space<smem>>) -> (i32, i32) {
    %c0_i32 = arith.constant 0 : i32
    %c0_i32_0 = arith.constant 0 : i32
    return %arg0, %c0_i32 : i32, i32
  }
}

</mosaic_0001>

<llo_original>
// kernel: tpu_custom_call.1
$region0: #{tpu_custom_call.1}
  #allocation0 [shape = 'u32[]', space=smem, size = 0x4, offset = 0x4, fixed_abs, tag = 'smem constant byte address 0x4 - core index']
  #allocation1 [shape = 'u32[144,128]{1,0:T(1,128)}', space=vmem, size = 0x12000, scoped, tag = 'internal scratch']
  #allocation2 [shape = 'f32[4,1]{1,0:T(4,128)}', space=vmem, size = 0x800, scoped, tag = 'scratch operand']
  #allocation3 [shape = 'f32[4,1]{1,0:T(4,128)}', space=vmem, size = 0x800, scoped, tag = 'scratch operand']
  #allocation4 [shape = 'f32[4,32]{1,0:T(4,128)}', space=vmem, size = 0x800, scoped, tag = 'scratch operand']
  #allocation5 [shape = 's32[1]{0}', space=sflag, size = 0x4, scoped, tag = 'scoped memory for tpu_custom_call.1']
  #allocation6 [shape = 's32[1]{0:T(128)S(6)}', space=smem, size = 0x200, scoped, tag = 'prefetched SMEM operand 0']
  #allocation7 [shape = 'f32[1,1]{1,0:T(1,128)S(6)}', space=smem, size = 0x200, scoped, tag = 'scoped memory for tpu_custom_call.1']
  %s0 = inlined_call_operand.<no memory space> [shape: s32[1], index: 0, kind: input, shape index: {}]
  %s1 = inlined_call_operand.vmem [shape: s32[4,1], index: 1, kind: input, shape index: {}]
  %s2 = inlined_call_operand.hbm [shape: bf16[4,24,32], index: 2, kind: input, shape index: {}]
  %s3 = inlined_call_operand.vmem [shape: bf16[32,128], index: 3, kind: input, shape index: {}]
  %s4 = inlined_call_operand.vmem [shape: f32[1,128], index: 4, kind: input, shape index: {}]
  %s5 = inlined_call_operand.vmem [shape: f32[1,128], index: 5, kind: input, shape index: {}]
  %s6 = inlined_call_operand.<no memory space> [shape: f32[1,1], index: 6, kind: input, shape index: {}]
  %s7 = inlined_call_operand.hbm [shape: bf16[32,128], index: 7, kind: input, shape index: {}]
  %s8 = inlined_call_operand.vmem [shape: f32[1,128], index: 8, kind: input, shape index: {}]
  %s9 = inlined_call_operand.hbm [shape: f32[4,128], index: 9, kind: output, shape index: {}]
  %s10 = sld [smem:[#allocation0]]
  $region85: #{tpu_custom_call.1} parent=0
    _
  %s12 = ssub.s32 1, %s10
  %s13 = scalar_select 0, %s12, %s10
  %14 = sst [smem:[#allocation6]] %s0
  %15 = sst [smem:[#allocation7]] %s6
  $region1: #{tpu_custom_call.1} parent=0
    #allocation8 [shape = 'u8[16384]{0}', space=vmem, size = 0x4000, scoped, tag = 'input window, operand 2']
    #allocation9 [shape = 's32[2]{0}', space=sflag, size = 0x8, scoped, tag = 'scoped memory for tpu_custom_call.1']
    #allocation10 [shape = 's32[2]{0}', space=sflag, size = 0x8, scoped, tag = 'scoped memory for tpu_custom_call.1']
    #allocation11 [shape = 'u8[8192]{0}', space=vmem, size = 0x2000, scoped, tag = 'input window, operand 7, single buffered']
    #allocation12 [shape = 's32[1]{0}', space=sflag, size = 0x4, scoped, tag = 'scoped memory for tpu_custom_call.1']
    #allocation13 [shape = 'u8[2048]{0}', space=vmem, size = 0x800, scoped, tag = 'output window, operand 0, single buffered']
    %16 = vsyncpa [#allocation9], 0
    %s17 = scalar_lea.sflag [#allocation9], 1
    %18 = vsyncpa %s17, 0
    %19 = vsyncpa [#allocation12], 0
    %20 = vsyncpa [#allocation10], 0
    loop: start=0, step=1, limit=5
    $region2: #{tpu_custom_call.1} parent=1 // loop_pre_header
      _
    $region3: #{tpu_custom_call.1} parent=1 // loop_header
      %s22 = sphi 0, %s26
      %p23 = scmp.ge.s32.totalorder %s22, 5
      %s29 = sphi 0, %s41
      %s30 = sphi 0, %s37
      %s31 = sphi 0, %s29
      %s32 = sphi 0, %s30
      %s33 = sphi 0, %s31
      %s34 = sphi 0, %s32
      %s44 = sphi 0, %s46
      %s47 = sphi 0, %s44
      %s48 = sphi 0, %s47
      %s64 = sphi 0, %s48
      %s72 = sphi 0, %s74
      %s75 = sphi 0, %s72
      %s76 = sphi 0, %s75
      %s92 = sphi 0, %s76
      %s96 = sphi 0, %s96
      %s98 = sphi 0, %s96
      %s99 = sphi 0, %s98
      %s113 = sphi 0, %s99
      %s117 = sphi 0, %s117
      %s119 = sphi 0, %s117
      %s120 = sphi 0, %s119
      %s134 = sphi 0, %s120
      %s138 = sphi 0, %s138
      %s140 = sphi 0, %s138
      %s141 = sphi 0, %s140
      %s155 = sphi 0, %s141
      %s159 = sphi 0, %s159
      %s161 = sphi 0, %s159
      %s162 = sphi 0, %s161
      %s176 = sphi 0, %s162
      %s180 = sphi 0, %s180
      %s182 = sphi 0, %s180
      %s183 = sphi 0, %s182
      %s197 = sphi 0, %s183
      %s201 = sphi 0, %s201
      %s203 = sphi 0, %s201
      %s204 = sphi 0, %s203
      %s218 = sphi 0, %s204
      %s224 = sphi 0, %s226
      %s227 = sphi 0, %s224
      %s228 = sphi 0, %s227
      %s244 = sphi 0, %s228
    $region4: #{tpu_custom_call.1} parent=1 // loop_header_branch
      %25 = sbr.rel (%p23) target = $region8
    $region5: #{tpu_custom_call.1} parent=1 // loop_body
      %s27 = ssub.s32 %s22, 1
      %s28 = ssub.s32 %s22, 2
      %s35 = sadd.s32 1, %s30
      %p36 = scmp.ge.s32.totalorder %s35, 3
      %s37 = scalar_select %p36, 0, %s35
      %s38 = sadd.s32 1, %s29
      %s39 = scalar_select %p36, %s38, %s29
      %p40 = scmp.ge.s32.totalorder %s39, 1
      %s41 = scalar_select %p40, 0, %s39
      %s42 = ssub.s32 %s29, %s41
      %p43 = scmp.eq.s32.totalorder %s42, 0
      %s45 = sadd.s32 %s44, 1
      %s46 = scalar_select %p43, %s44, %s45
      %p49 = pneg %p43
      %p50 = scmp.eq.s32.totalorder %s22, 2
      %p51 = por %p49, %p50
      %p52 = scmp.ne.s32.totalorder %s44, %s47
      %p53 = scmp.eq.s32.totalorder %s22, 0
      %p54 = por %p52, %p53
      %p55 = scmp.ne.s32.totalorder %s44, %s47
      %p56 = scmp.eq.s32.totalorder %s27, 2
      %p57 = por %p55, %p56
      %p58 = scmp.ne.s32.totalorder %s47, %s48
      %p59 = scmp.eq.s32.totalorder %s27, 0
      %p60 = por %p58, %p59
      %p61 = scmp.ne.s32.totalorder %s47, %s48
      %p62 = scmp.eq.s32.totalorder %s28, 2
      %p63 = por %p61, %p62
      %p65 = scmp.ne.s32.totalorder %s48, %s64
      %p66 = scmp.eq.s32.totalorder %s28, 0
      %p67 = por %p65, %p66
      %s68 = ssub.s32 %s29, %s41
      %s69 = ssub.s32 %s30, %s37
      %s70 = sor.u32 %s68, %s69
      %p71 = scmp.eq.s32.totalorder %s70, 0
      %s73 = sadd.s32 %s72, 1
      %s74 = scalar_select %p71, %s72, %s73
      %p77 = pneg %p71
      %p78 = scmp.eq.s32.totalorder %s22, 2
      %p79 = por %p77, %p78
      %p80 = scmp.ne.s32.totalorder %s72, %s75
      %p81 = scmp.eq.s32.totalorder %s22, 0
      %p82 = por %p80, %p81
      %p83 = scmp.ne.s32.totalorder %s72, %s75
      %p84 = scmp.eq.s32.totalorder %s27, 2
      %p85 = por %p83, %p84
      %p86 = scmp.ne.s32.totalorder %s75, %s76
      %p87 = scmp.eq.s32.totalorder %s27, 0
      %p88 = por %p86, %p87
      %p89 = scmp.ne.s32.totalorder %s75, %s76
      %p90 = scmp.eq.s32.totalorder %s28, 2
      %p91 = por %p89, %p90
      %p93 = scmp.ne.s32.totalorder %s76, %s92
      %p94 = scmp.eq.s32.totalorder %s28, 0
      %p95 = por %p93, %p94
      %s97 = sadd.s32 %s96, 1
      %p100 = scmp.eq.s32.totalorder %s22, 2
      %p101 = scmp.ne.s32.totalorder %s96, %s98
      %p102 = scmp.eq.s32.totalorder %s22, 0
      %p103 = por %p101, %p102
      %p104 = scmp.ne.s32.totalorder %s96, %s98
      %p105 = scmp.eq.s32.totalorder %s27, 2
      %p106 = por %p104, %p105
      %p107 = scmp.ne.s32.totalorder %s98, %s99
      %p108 = scmp.eq.s32.totalorder %s27, 0
      %p109 = por %p107, %p108
      %p110 = scmp.ne.s32.totalorder %s98, %s99
      %p111 = scmp.eq.s32.totalorder %s28, 2
      %p112 = por %p110, %p111
      %p114 = scmp.ne.s32.totalorder %s99, %s113
      %p115 = scmp.eq.s32.totalorder %s28, 0
      %p116 = por %p114, %p115
      %s118 = sadd.s32 %s117, 1
      %p121 = scmp.eq.s32.totalorder %s22, 2
      %p122 = scmp.ne.s32.totalorder %s117, %s119
      %p123 = scmp.eq.s32.totalorder %s22, 0
      %p124 = por %p122, %p123
      %p125 = scmp.ne.s32.totalorder %s117, %s119
      %p126 = scmp.eq.s32.totalorder %s27, 2
      %p127 = por %p125, %p126
      %p128 = scmp.ne.s32.totalorder %s119, %s120
      %p129 = scmp.eq.s32.totalorder %s27, 0
      %p130 = por %p128, %p129
      %p131 = scmp.ne.s32.totalorder %s119, %s120
      %p132 = scmp.eq.s32.totalorder %s28, 2
      %p133 = por %p131, %p132
      %p135 = scmp.ne.s32.totalorder %s120, %s134
      %p136 = scmp.eq.s32.totalorder %s28, 0
      %p137 = por %p135, %p136
      %s139 = sadd.s32 %s138, 1
      %p142 = scmp.eq.s32.totalorder %s22, 2
      %p143 = scmp.ne.s32.totalorder %s138, %s140
      %p144 = scmp.eq.s32.totalorder %s22, 0
      %p145 = por %p143, %p144
      %p146 = scmp.ne.s32.totalorder %s138, %s140
      %p147 = scmp.eq.s32.totalorder %s27, 2
      %p148 = por %p146, %p147
      %p149 = scmp.ne.s32.totalorder %s140, %s141
      %p150 = scmp.eq.s32.totalorder %s27, 0
      %p151 = por %p149, %p150
      %p152 = scmp.ne.s32.totalorder %s140, %s141
      %p153 = scmp.eq.s32.totalorder %s28, 2
      %p154 = por %p152, %p153
      %p156 = scmp.ne.s32.totalorder %s141, %s155
      %p157 = scmp.eq.s32.totalorder %s28, 0
      %p158 = por %p156, %p157
      %s160 = sadd.s32 %s159, 1
      %p163 = scmp.eq.s32.totalorder %s22, 2
      %p164 = scmp.ne.s32.totalorder %s159, %s161
      %p165 = scmp.eq.s32.totalorder %s22, 0
      %p166 = por %p164, %p165
      %p167 = scmp.ne.s32.totalorder %s159, %s161
      %p168 = scmp.eq.s32.totalorder %s27, 2
      %p169 = por %p167, %p168
      %p170 = scmp.ne.s32.totalorder %s161, %s162
      %p171 = scmp.eq.s32.totalorder %s27, 0
      %p172 = por %p170, %p171
      %p173 = scmp.ne.s32.totalorder %s161, %s162
      %p174 = scmp.eq.s32.totalorder %s28, 2
      %p175 = por %p173, %p174
      %p177 = scmp.ne.s32.totalorder %s162, %s176
      %p178 = scmp.eq.s32.totalorder %s28, 0
      %p179 = por %p177, %p178
      %s181 = sadd.s32 %s180, 1
      %p184 = scmp.eq.s32.totalorder %s22, 2
      %p185 = scmp.ne.s32.totalorder %s180, %s182
      %p186 = scmp.eq.s32.totalorder %s22, 0
      %p187 = por %p185, %p186
      %p188 = scmp.ne.s32.totalorder %s180, %s182
      %p189 = scmp.eq.s32.totalorder %s27, 2
      %p190 = por %p188, %p189
      %p191 = scmp.ne.s32.totalorder %s182, %s183
      %p192 = scmp.eq.s32.totalorder %s27, 0
      %p193 = por %p191, %p192
      %p194 = scmp.ne.s32.totalorder %s182, %s183
      %p195 = scmp.eq.s32.totalorder %s28, 2
      %p196 = por %p194, %p195
      %p198 = scmp.ne.s32.totalorder %s183, %s197
      %p199 = scmp.eq.s32.totalorder %s28, 0
      %p200 = por %p198, %p199
      %s202 = sadd.s32 %s201, 1
      %p205 = scmp.eq.s32.totalorder %s22, 2
      %p206 = scmp.ne.s32.totalorder %s201, %s203
      %p207 = scmp.eq.s32.totalorder %s22, 0
      %p208 = por %p206, %p207
      %p209 = scmp.ne.s32.totalorder %s201, %s203
      %p210 = scmp.eq.s32.totalorder %s27, 2
      %p211 = por %p209, %p210
      %p212 = scmp.ne.s32.totalorder %s203, %s204
      %p213 = scmp.eq.s32.totalorder %s27, 0
      %p214 = por %p212, %p213
      %p215 = scmp.ne.s32.totalorder %s203, %s204
      %p216 = scmp.eq.s32.totalorder %s28, 2
      %p217 = por %p215, %p216
      %p219 = scmp.ne.s32.totalorder %s204, %s218
      %p220 = scmp.eq.s32.totalorder %s28, 0
      %p221 = por %p219, %p220
      %s222 = ssub.s32 %s29, %s41
      %p223 = scmp.eq.s32.totalorder %s222, 0
      %s225 = sadd.s32 %s224, 1
      %s226 = scalar_select %p223, %s224, %s225
      %p229 = pneg %p223
      %p230 = scmp.eq.s32.totalorder %s22, 2
      %p231 = por %p229, %p230
      %p232 = scmp.ne.s32.totalorder %s224, %s227
      %p233 = scmp.eq.s32.totalorder %s22, 0
      %p234 = por %p232, %p233
      %p235 = scmp.ne.s32.totalorder %s224, %s227
      %p236 = scmp.eq.s32.totalorder %s27, 2
      %p237 = por %p235, %p236
      %p238 = scmp.ne.s32.totalorder %s227, %s228
      %p239 = scmp.eq.s32.totalorder %s27, 0
      %p240 = por %p238, %p239
      %p241 = scmp.ne.s32.totalorder %s227, %s228
      %p242 = scmp.eq.s32.totalorder %s28, 2
      %p243 = por %p241, %p242
      %p245 = scmp.ne.s32.totalorder %s228, %s244
      %p246 = scmp.eq.s32.totalorder %s28, 0
      %p247 = por %p245, %p246
      %p248 = scmp.le.s32.totalorder 1, %s22
      %p249 = scmp.lt.s32.totalorder %s22, 4
      %p250 = pnand %p248, %p249
      %p251 = pneg %p250
      // Predicated region
      $region9: #{tpu_custom_call.1} parent=5 // pred_check
        _
      $region10: #{tpu_custom_call.1} parent=5 // pred_check_branch
        %253 = sbr.rel (%p250) target = $region12
      $region11: #{tpu_custom_call.1} parent=5 // pred_region
        %s254 = ssub.s32 %s22, 1
        // Predicated region
        $region13: #{tpu_custom_call.1} parent=11 // pred_check
          %p255 = pneg %p60
        $region14: #{tpu_custom_call.1} parent=11 // pred_check_branch
          %257 = sbr.rel (%p255) target = $region16
        $region15: #{tpu_custom_call.1} parent=11 // pred_region
          %p258 = scmp.lt.s32.totalorder %s31, 0
          %s259 = scalar_select %p258, %s31, 0
          %s260 = smul.addr %s259, 4
          %s261 = scalar_lea.vmem %s1, %s260
        $region16: #{tpu_custom_call.1} parent=11 // pred_fallthru
          _
        // Predicated region
        $region17: #{tpu_custom_call.1} parent=11 // pred_check
          %p262 = pneg %p109
        $region18: #{tpu_custom_call.1} parent=11 // pred_check_branch
          %264 = sbr.rel (%p262) target = $region20
        $region19: #{tpu_custom_call.1} parent=11 // pred_region
          _
        $region20: #{tpu_custom_call.1} parent=11 // pred_fallthru
          _
        // Predicated region
        $region21: #{tpu_custom_call.1} parent=11 // pred_check
          %p265 = pneg %p130
        $region22: #{tpu_custom_call.1} parent=11 // pred_check_branch
          %267 = sbr.rel (%p265) target = $region24
        $region23: #{tpu_custom_call.1} parent=11 // pred_region
          _
        $region24: #{tpu_custom_call.1} parent=11 // pred_fallthru
          _
        // Predicated region
        $region25: #{tpu_custom_call.1} parent=11 // pred_check
          %p268 = pneg %p151
        $region26: #{tpu_custom_call.1} parent=11 // pred_check_branch
          %270 = sbr.rel (%p268) target = $region28
        $region27: #{tpu_custom_call.1} parent=11 // pred_region
          _
        $region28: #{tpu_custom_call.1} parent=11 // pred_fallthru
          _
        // Predicated region
        $region29: #{tpu_custom_call.1} parent=11 // pred_check
          %p271 = pneg %p172
        $region30: #{tpu_custom_call.1} parent=11 // pred_check_branch
          %273 = sbr.rel (%p271) target = $region32
        $region31: #{tpu_custom_call.1} parent=11 // pred_region
          _
        $region32: #{tpu_custom_call.1} parent=11 // pred_fallthru
          _
        // Predicated region
        $region33: #{tpu_custom_call.1} parent=11 // pred_check
          %p274 = pneg %p193
        $region34: #{tpu_custom_call.1} parent=11 // pred_check_branch
          %276 = sbr.rel (%p274) target = $region36
        $region35: #{tpu_custom_call.1} parent=11 // pred_region
          %s278 = ssub.s32 256, 256
          %279 = vsyncadd [#allocation12], %s278
          %s280 = sshll.u32 [#allocation11], 4
          %s281 = int_to_ptr.vmem [resolvable:$true] %s280
          %286 = dma.hbm_to_vmem [thread:$0]  %s7, 256, %s281, [#allocation12], 64, 64, 4
        $region36: #{tpu_custom_call.1} parent=11 // pred_fallthru
          _
        // Predicated region
        $region37: #{tpu_custom_call.1} parent=11 // pred_check
          %p287 = pneg %p214
        $region38: #{tpu_custom_call.1} parent=11 // pred_check_branch
          %289 = sbr.rel (%p287) target = $region40
        $region39: #{tpu_custom_call.1} parent=11 // pred_region
          _
        $region40: #{tpu_custom_call.1} parent=11 // pred_fallthru
          _
      $region12: #{tpu_custom_call.1} parent=5 // pred_fallthru
        _
      %p290 = scmp.lt.s32.totalorder %s22, 3
      // Predicated region
      $region41: #{tpu_custom_call.1} parent=5 // pred_check
        %p291 = pneg %p290
      $region42: #{tpu_custom_call.1} parent=5 // pred_check_branch
        %293 = sbr.rel (%p291) target = $region44
      $region43: #{tpu_custom_call.1} parent=5 // pred_region
        // Predicated region
        $region45: #{tpu_custom_call.1} parent=43 // pred_check
          %p294 = pneg %p82
        $region46: #{tpu_custom_call.1} parent=43 // pred_check_branch
          %296 = sbr.rel (%p294) target = $region48
        $region47: #{tpu_custom_call.1} parent=43 // pred_region
          %s297 = sand.u32 %s72, 1
          %s298 = scalar_lea.sflag [#allocation9], %s297
          %s299 = sand.u32 %s72, 1
          %s300 = smul.addr %s299, 16
          %s301 = scalar_lea.vmem [#allocation8], %s300
          %s302 = smul.u32 4, %s29
          %s304 = ssub.s32 256, 256
          %305 = vsyncadd %s298, %s304
          %s306 = smul.addr %s302, 3
          %s307 = sadd.s32 %s30, %s306
          %s308 = smul.addr %s307, 64
          %s309 = scalar_lea.hbm %s2, %s308
          %s310 = sshll.u32 %s301, 4
          %s311 = int_to_ptr.vmem [resolvable:$true] %s310
          %316 = dma.hbm_to_vmem [thread:$0]  %s309, 256, %s311, %s298, 192, 64, 4
        $region48: #{tpu_custom_call.1} parent=43 // pred_fallthru
          _
      $region44: #{tpu_custom_call.1} parent=5 // pred_fallthru
        _
      %p317 = scmp.le.s32.totalorder 1, %s22
      %p318 = scmp.lt.s32.totalorder %s22, 4
      %p319 = pnand %p317, %p318
      %p320 = pneg %p319
      // Predicated region
      $region49: #{tpu_custom_call.1} parent=5 // pred_check
        _
      $region50: #{tpu_custom_call.1} parent=5 // pred_check_branch
        %322 = sbr.rel (%p319) target = $region52
      $region51: #{tpu_custom_call.1} parent=5 // pred_region
        %s323 = ssub.s32 %s22, 1
        %s324 = sand.u32 %s75, 1
        %s325 = scalar_lea.sflag [#allocation9], %s324
        %s326 = sand.u32 %s75, 1
        %s327 = smul.addr %s326, 16
        %s328 = scalar_lea.vmem [#allocation8], %s327
        // Predicated region
        $region53: #{tpu_custom_call.1} parent=51 // pred_check
          %p329 = pneg %p88
        $region54: #{tpu_custom_call.1} parent=51 // pred_check_branch
          %331 = sbr.rel (%p329) target = $region56
        $region55: #{tpu_custom_call.1} parent=51 // pred_region
          %332 = dma.done %s325, 256
        $region56: #{tpu_custom_call.1} parent=51 // pred_fallthru
          _
        // Predicated region
        $region57: #{tpu_custom_call.1} parent=51 // pred_check
          %p333 = pneg %p193
        $region58: #{tpu_custom_call.1} parent=51 // pred_check_branch
          %335 = sbr.rel (%p333) target = $region60
        $region59: #{tpu_custom_call.1} parent=51 // pred_region
          %336 = dma.done [#allocation12], 256
        $region60: #{tpu_custom_call.1} parent=51 // pred_fallthru
          _
        %p337 = scmp.lt.s32.totalorder %s31, 0
        %s338 = scalar_select %p337, %s31, 0
        %s339 = smul.addr %s338, 4
        %s340 = scalar_lea.vmem %s1, %s339
        %p341 = pneg %p60
        %p342 = pneg %p57
        %s343 = sand.u32 %s75, 1
        %s344 = scalar_lea.sflag [#allocation9], %s343
        %s345 = sand.u32 %s75, 1
        %s346 = smul.addr %s345, 16
        %s347 = scalar_lea.vmem [#allocation8], %s346
        %p348 = pneg %p88
        %p349 = pneg %p85
        %p350 = pneg %p109
        %p351 = pneg %p106
        %p352 = pneg %p130
        %p353 = pneg %p127
        %p354 = pneg %p151
        %p355 = pneg %p148
        %p356 = pneg %p172
        %p357 = pneg %p169
        %p358 = pneg %p193
        %p359 = pneg %p190
        %p360 = pneg %p214
        %p361 = pneg %p211
        %p362 = pneg %p240
        %p363 = pneg %p237
        %p364 = scmp.lt.s32.totalorder %s31, 0
        %s365 = scalar_select %p364, %s31, 0
        %s366 = smul.addr %s365, 4
        %s367 = scalar_lea.vmem %s1, %s366
        %s368 = smul.u32 4, %s31
        %s370 = smul.u32 %s32, 8
        %p371 = scmp.eq.s32.totalorder %s32, 0
        // Predicated region
        $region61: #{tpu_custom_call.1} parent=51 // pred_check
          %p372 = pneg %p371
        $region62: #{tpu_custom_call.1} parent=51 // pred_check_branch
          %374 = sbr.rel (%p372) target = $region64
        $region63: #{tpu_custom_call.1} parent=51 // pred_region
          %vm375 = vcmask 3072
          %376 = vst.msk [vmem:[#allocation2] sm:$0xf] %vm375, -1e+30
          %377 = vst.msk [vmem:[#allocation3] sm:$0xf] %vm375, 0.0
          %vm378 = vcmask 257024
          %379 = vst.msk [vmem:[#allocation4] sm:$0xf] %vm378, 0.0
        $region64: #{tpu_custom_call.1} parent=51 // pred_fallthru
          _
        %s380 = sld [smem:[#allocation6 + %s31]]
        %p381 = scmp.lt.s32.totalorder %s370, %s380
        %p382 = por %p371, %p381
        // Predicated region
        $region65: #{tpu_custom_call.1} parent=51 // pred_check
          %p383 = pneg %p382
        $region66: #{tpu_custom_call.1} parent=51 // pred_check_branch
          %385 = sbr.rel (%p383) target = $region68
        $region67: #{tpu_custom_call.1} parent=51 // pred_region
          %v386 = vld [vmem:[%s328] sm:$0xf]
          %v387 = vld [vmem:[%s328 + $0x4] sm:$0xf]
          %v388 = vld [vmem:[%s328 + $0x8] sm:$0xf]
          %v389 = vld [vmem:[%s328 + $0xc] sm:$0xf]
          %v390 = vld [vmem:[%s3] sm:$0xf]
          %v391 = vld [vmem:[%s3 + $0x4] sm:$0xf]
          %v392 = vld [vmem:[%s3 + $0x8] sm:$0xf]
          %v393 = vld [vmem:[%s3 + $0xc] sm:$0xf]
          %v394 = vld [vmem:[%s4] sm:$0x1]
          %v396 = vlaneseq
          %v397 = vshrl.u32 %v396, 7
          %v398 = vsub.s32 0, %v397
          %v399 = vrot.slane %v394, %v398
          %v405 = vunpack.c.l.b16 %v386
          %v406 = vunpack.c.l.b16 %v387
          %v407 = vunpack.c.l.b16 %v388
          %v408 = vunpack.c.l.b16 %v389
          %v409 = vpack.c.b16 %v406, %v405
          %v410 = vpack.c.b16 %v408, %v407
          %v415 = vunpack.c.l.b16 %v390
          %v416 = vunpack.c.l.b16 %v391
          %v417 = vunpack.c.l.b16 %v392
          %v418 = vunpack.c.l.b16 %v393
          %v419 = vpack.c.b16 %v416, %v415
          %v420 = vpack.c.b16 %v418, %v417
          %vm423 = vcmask 261120
          %v425 = vsel %vm423, %v409, 0
          %v428 = vsel %vm423, %v410, 0
          %430 = vmatprep.subr.bf16.mxu0 0
          %431 = vmatpush1.bf16.msra.mxu0 %v419
          %432 = vmatprep.subr.bf16.mxu0 0
          %433 = vmatpush1.bf16.msra.mxu0 %v420
          %434 = vmatprep.subr.bf16.mxu0 0
          %435 = vmatpush1.bf16.msra.mxu0 0
          %436 = vmatprep.subr.bf16.mxu0 0
          %437 = vmatpush1.bf16.msra.mxu0 0
          %438 = vmatprep.subr.bf16.mxu0 0
          %439 = vmatpush1.bf16.msra.mxu0 0
          %440 = vmatprep.subr.bf16.mxu0 0
          %441 = vmatpush1.bf16.msra.mxu0 0
          %442 = vmatprep.subr.bf16.mxu0 0
          %443 = vmatpush1.bf16.msra.mxu0 0
          %444 = vmatprep.subr.bf16.mxu0 0
          %445 = vmatpush1.bf16.msra.mxu0 0
          %446 = vmatprep.subr.bf16.mxu0 0
          %447 = vmatpush1.bf16.msra.mxu0 0
          %448 = vmatprep.subr.bf16.mxu0 0
          %449 = vmatpush1.bf16.msra.mxu0 0
          %450 = vmatprep.subr.bf16.mxu0 0
          %451 = vmatpush1.bf16.msra.mxu0 0
          %452 = vmatprep.subr.bf16.mxu0 0
          %453 = vmatpush1.bf16.msra.mxu0 0
          %454 = vmatprep.subr.bf16.mxu0 0
          %455 = vmatpush1.bf16.msra.mxu0 0
          %456 = vmatprep.subr.bf16.mxu0 0
          %457 = vmatpush1.bf16.msra.mxu0 0
          %458 = vmatprep.subr.bf16.mxu0 0
          %459 = vmatpush1.bf16.msra.mxu0 0
          %460 = vmatprep.subr.bf16.mxu0 0
          %461 = vmatpush1.bf16.msra.mxu0 0
          %462 = vmatprep.mubr.bf16.mxu0 0
          %463 = vmatmul.mubr.bf16.gmra.mrb[0].mxu0 %v425
          %v464 = vpop.f32.mrb[0].mxu0
          %v465 = vadd.f32 %v399, %v464
          %v466 = vpop.f32.mrb[0].mxu0
          %v467 = vpop.f32.mrb[0].mxu0
          %v468 = vadd.f32 %v399, %v467
          %v469 = vpop.f32.mrb[0].mxu0
          %470 = vmatprep.mubr.bf16.mxu0 0
          %471 = vmatmul.mubr.bf16.gmra.mrb[0].mxu0 %v428
          %v472 = vpop.f32.mrb[0].mxu0
          %v473 = vadd.f32 %v399, %v472
          %v474 = vpop.f32.mrb[0].mxu0
          %v475 = vpop.f32.mrb[0].mxu0
          %v476 = vadd.f32 %v399, %v475
          %v477 = vpop.f32.mrb[0].mxu0
          %478 = vdwg.mxu0
          %v479 = vmax.f32 %v465, 0.0
          %v480 = vmax.f32 %v468, 0.0
          %v481 = vmax.f32 %v473, 0.0
          %v482 = vmax.f32 %v476, 0.0
          %v483 = vld [vmem:[%s5] sm:$0x1]
          %v485 = vlaneseq
          %v486 = vshrl.u32 %v485, 7
          %v487 = vsub.s32 0, %v486
          %v488 = vrot.slane %v483, %v487
          %v490 = vmul.f32 %v479, %v488
          %v491 = vmul.f32 %v480, %v488
          %v492 = vmul.f32 %v481, %v488
          %v493 = vmul.f32 %v482, %v488
          %494 = vadd.xlane.f32.xlu0 %v490
          %v495 = vpop.xlane.xlu0 %494
          %496 = vadd.xlane.f32.xlu0 %v491
          %v497 = vpop.xlane.xlu0 %496
          %498 = vadd.xlane.f32.xlu0 %v492
          %v499 = vpop.xlane.xlu0 %498
          %500 = vadd.xlane.f32.xlu0 %v493
          %v501 = vpop.xlane.xlu0 %500
          %s502 = sld [smem:[#allocation7]]
          %v503 = vstv %s502
          %v504 = vadd.f32 %v495, %v503
          %v505 = vadd.f32 %v497, %v503
          %v506 = vadd.f32 %v499, %v503
          %v507 = vadd.f32 %v501, %v503
          %v508 = vlaneseq
          %v509 = vand.u32 %v508, 127
          %v510 = vstv %s370
          %v511 = vadd.s32 %v510, %v509
          %v512 = vld [vmem:[%s367] sm:$0xf]
          %513 = vset.pattern.permute.xlu0 0
          %514 = vperm.xlu0 %513, %v512
          %v515 = vpop.permute.xlu0 %514
          %vm516 = vcmp.lt.s32.totalorder %v511, %v515
          %v521 = vlaneseq
          %v522 = vshrl.u32 %v521, 7
          %v523 = vsub.s32 %v509, %v522
          %v524 = vrot.slane %v504, %v523
          %v525 = vlaneseq
          %v526 = vshrl.u32 %v525, 7
          %v527 = vsub.s32 %v509, %v526
          %v528 = vrot.slane %v505, %v527
          %v529 = vlaneseq
          %v530 = vshrl.u32 %v529, 7
          %v531 = vsub.s32 %v509, %v530
          %v532 = vrot.slane %v506, %v531
          %v533 = vlaneseq
          %v534 = vshrl.u32 %v533, 7
          %v535 = vsub.s32 %v509, %v534
          %v536 = vrot.slane %v507, %v535
          %vm537 = vcmask 1041409
          %v538 = vsel %vm537, %v528, %v524
          %vm539 = vcmask 1042434
          %v540 = vsel %vm539, %v532, %v538
          %vm541 = vcmask 1043459
          %v542 = vsel %vm541, %v536, %v540
          %v544 = vsel %vm516, %v542, -1e+30
          %v545 = vld [vmem:[#allocation2] sm:$0xf]
          %vm546 = vcmask 60416
          %v547 = vsel %vm546, %v544, -inf
          %548 = vmax.xlane.f32.xlu0 %v547
          %v549 = vpop.xlane.xlu0 %548
          %v550 = vmax.f32 %v545, %v549
          %v551 = vsub.f32 %v545, %v550
          %v552 = vmul.f32 %v551, 1.442695
          %v553 = vpow.pop %v552
          %555 = vset.pattern.permute.xlu0 0
          %556 = vperm.xlu0 %555, %v550
          %v557 = vpop.permute.xlu0 %556
          %v559 = vsub.f32 %v544, %v557
          %v560 = vmul.f32 %v559, 1.442695
          %v561 = vpow.pop %v560
          %v562 = vld [vmem:[#allocation3] sm:$0xf]
          %v563 = vmul.f32 %v553, %v562
          %v564 = vsel %vm546, %v561, 0.0
          %565 = vadd.xlane.f32.xlu0 %v564
          %v566 = vpop.xlane.xlu0 %565
          %v567 = vadd.f32 %v563, %v566
          %vm568 = vcmask 3072
          %569 = vst.msk [vmem:[#allocation3] sm:$0xf] %vm568, %v567
          %v570 = vlaneseq
          %v571 = vshrl.u32 %v570, 7
          %v572 = vsub.s32 0, %v571
          %v573 = vrot.slane %v561, %v572
          %575 = vbcast.lane.b32.xlu0 %v573, 256
          %v576 = vpop.permute.xlu0 %575
          %v577 = vlaneseq
          %v578 = vshrl.u32 %v577, 7
          %v579 = vsub.s32 1, %v578
          %v580 = vrot.slane %v561, %v579
          %582 = vbcast.lane.b32.xlu0 %v580, 256
          %v583 = vpop.permute.xlu0 %582
          %v584 = vlaneseq
          %v585 = vshrl.u32 %v584, 7
          %v586 = vsub.s32 2, %v585
          %v587 = vrot.slane %v561, %v586
          %589 = vbcast.lane.b32.xlu0 %v587, 256
          %v590 = vpop.permute.xlu0 %589
          %v591 = vlaneseq
          %v592 = vshrl.u32 %v591, 7
          %v593 = vsub.s32 3, %v592
          %v594 = vrot.slane %v561, %v593
          %596 = vbcast.lane.b32.xlu0 %v594, 256
          %v597 = vpop.permute.xlu0 %596
          %v598 = vunpack.c.l.bf16 %v386
          %v599 = vunpack.c.l.bf16 %v387
          %v600 = vunpack.c.l.bf16 %v388
          %v601 = vunpack.c.l.bf16 %v389
          %v602 = vmul.f32 %v576, %v598
          %v603 = vmul.f32 %v583, %v599
          %v604 = vmul.f32 %v590, %v600
          %v605 = vmul.f32 %v597, %v601
          %v606 = vsel %vm423, %v602, 0.0
          %v607 = vrot.slane %v606, 4
          %v608 = vadd.f32 %v606, %v607
          %v609 = vrot.slane %v608, 2
          %v610 = vadd.f32 %v608, %v609
          %v611 = vrot.slane %v610, 1
          %v612 = vadd.f32 %v610, %v611
          %v613 = vsel %vm423, %v603, 0.0
          %v614 = vrot.slane %v613, 4
          %v615 = vadd.f32 %v613, %v614
          %v616 = vrot.slane %v615, 2
          %v617 = vadd.f32 %v615, %v616
          %v618 = vrot.slane %v617, 1
          %v619 = vadd.f32 %v617, %v618
          %v620 = vsel %vm423, %v604, 0.0
          %v621 = vrot.slane %v620, 4
          %v622 = vadd.f32 %v620, %v621
          %v623 = vrot.slane %v622, 2
          %v624 = vadd.f32 %v622, %v623
          %v625 = vrot.slane %v624, 1
          %v626 = vadd.f32 %v624, %v625
          %v627 = vsel %vm423, %v605, 0.0
          %v628 = vrot.slane %v627, 4
          %v629 = vadd.f32 %v627, %v628
          %v630 = vrot.slane %v629, 2
          %v631 = vadd.f32 %v629, %v630
          %v632 = vrot.slane %v631, 1
          %v633 = vadd.f32 %v631, %v632
          %v634 = vld [vmem:[#allocation4] sm:$0xf]
          %636 = vset.pattern.permute.xlu0 0
          %637 = vperm.xlu0 %636, %v553
          %v638 = vpop.permute.xlu0 %637
          %v640 = vmul.f32 %v638, %v634
          %v645 = vsel %vm537, %v619, %v612
          %v646 = vsel %vm539, %v626, %v645
          %v647 = vsel %vm541, %v633, %v646
          %v649 = vadd.f32 %v640, %v647
          %vm650 = vcmask 257024
          %651 = vst.msk [vmem:[#allocation4] sm:$0xf] %vm650, %v649
          %652 = vst.msk [vmem:[#allocation2] sm:$0xf] %vm568, %v550
        $region68: #{tpu_custom_call.1} parent=51 // pred_fallthru
          _
        %p653 = scmp.eq.s32.totalorder %s32, 2
        // Predicated region
        $region69: #{tpu_custom_call.1} parent=51 // pred_check
          %p654 = pneg %p653
        $region70: #{tpu_custom_call.1} parent=51 // pred_check_branch
          %656 = sbr.rel (%p654) target = $region72
        $region71: #{tpu_custom_call.1} parent=51 // pred_region
          %v657 = vld [vmem:[#allocation3] sm:$0xf]
          %v658 = vrcp.pop %v657
          %v659 = vld [vmem:[#allocation4] sm:$0xf]
          %661 = vset.pattern.permute.xlu0 0
          %662 = vperm.xlu0 %661, %v658
          %v663 = vpop.permute.xlu0 %662
          %v665 = vmul.f32 %v659, %v663
          %v666 = vpack.c.bf16 %v665, %v665
          %v667 = vld [vmem:[#allocation11] sm:$0xf]
          %v668 = vld [vmem:[#allocation11 + $0x4] sm:$0xf]
          %v669 = vld [vmem:[#allocation11 + $0x8] sm:$0xf]
          %v670 = vld [vmem:[#allocation11 + $0xc] sm:$0xf]
          %v671 = vld [vmem:[%s8] sm:$0x1]
          %v673 = vlaneseq
          %v674 = vshrl.u32 %v673, 7
          %v675 = vsub.s32 0, %v674
          %v676 = vrot.slane %v671, %v675
          %v682 = vunpack.c.l.b16 %v667
          %v683 = vunpack.c.l.b16 %v668
          %v684 = vunpack.c.l.b16 %v669
          %v685 = vunpack.c.l.b16 %v670
          %v686 = vpack.c.b16 %v683, %v682
          %v687 = vpack.c.b16 %v685, %v684
          %vm690 = vcmask 261120
          %v692 = vsel %vm690, %v666, 0
          %694 = vmatprep.subr.bf16.mxu0 0
          %695 = vmatpush1.bf16.msra.mxu0 %v686
          %696 = vmatprep.subr.bf16.mxu0 0
          %697 = vmatpush1.bf16.msra.mxu0 %v687
          %698 = vmatprep.subr.bf16.mxu0 0
          %699 = vmatpush1.bf16.msra.mxu0 0
          %700 = vmatprep.subr.bf16.mxu0 0
          %701 = vmatpush1.bf16.msra.mxu0 0
          %702 = vmatprep.subr.bf16.mxu0 0
          %703 = vmatpush1.bf16.msra.mxu0 0
          %704 = vmatprep.subr.bf16.mxu0 0
          %705 = vmatpush1.bf16.msra.mxu0 0
          %706 = vmatprep.subr.bf16.mxu0 0
          %707 = vmatpush1.bf16.msra.mxu0 0
          %708 = vmatprep.subr.bf16.mxu0 0
          %709 = vmatpush1.bf16.msra.mxu0 0
          %710 = vmatprep.subr.bf16.mxu0 0
          %711 = vmatpush1.bf16.msra.mxu0 0
          %712 = vmatprep.subr.bf16.mxu0 0
          %713 = vmatpush1.bf16.msra.mxu0 0
          %714 = vmatprep.subr.bf16.mxu0 0
          %715 = vmatpush1.bf16.msra.mxu0 0
          %716 = vmatprep.subr.bf16.mxu0 0
          %717 = vmatpush1.bf16.msra.mxu0 0
          %718 = vmatprep.subr.bf16.mxu0 0
          %719 = vmatpush1.bf16.msra.mxu0 0
          %720 = vmatprep.subr.bf16.mxu0 0
          %721 = vmatpush1.bf16.msra.mxu0 0
          %722 = vmatprep.subr.bf16.mxu0 0
          %723 = vmatpush1.bf16.msra.mxu0 0
          %724 = vmatprep.subr.bf16.mxu0 0
          %725 = vmatpush1.bf16.msra.mxu0 0
          %726 = vmatprep.mubr.bf16.mxu0 0
          %727 = vmatmul.mubr.bf16.gmra.mrb[0].mxu0 %v692
          %v728 = vpop.f32.mrb[0].mxu0
          %v729 = vadd.f32 %v676, %v728
          %v730 = vpop.f32.mrb[0].mxu0
          %v731 = vpop.f32.mrb[0].mxu0
          %v732 = vpop.f32.mrb[0].mxu0
          %733 = vdwg.mxu0
          %734 = vst [vmem:[#allocation13] sm:$0xf] %v729
        $region72: #{tpu_custom_call.1} parent=51 // pred_fallthru
          _
        // Predicated region
        $region73: #{tpu_custom_call.1} parent=51 // pred_check
          %p735 = pneg %p237
        $region74: #{tpu_custom_call.1} parent=51 // pred_check_branch
          %737 = sbr.rel (%p735) target = $region76
        $region75: #{tpu_custom_call.1} parent=51 // pred_region
          %s739 = ssub.s32 64, 64
          %740 = vsyncadd [#allocation10], %s739
          %s741 = smul.addr %s31, 64
          %s742 = scalar_lea.hbm %s9, %s741
          %s744 = sshll.u32 [#allocation13], 4
          %s745 = int_to_ptr.vmem [resolvable:$true] %s744
          %747 = dma.vmem_to_hbm [thread:$0]  %s745, 64, %s742, [#allocation10]
        $region76: #{tpu_custom_call.1} parent=51 // pred_fallthru
          _
        // Predicated region
        $region77: #{tpu_custom_call.1} parent=51 // pred_check
          %p748 = pneg %p237
        $region78: #{tpu_custom_call.1} parent=51 // pred_check_branch
          %750 = sbr.rel (%p748) target = $region80
        $region79: #{tpu_custom_call.1} parent=51 // pred_region
          %751 = dma.done [#allocation10], 64
        $region80: #{tpu_custom_call.1} parent=51 // pred_fallthru
          _
      $region52: #{tpu_custom_call.1} parent=5 // pred_fallthru
        _
      %p752 = scmp.le.s32.totalorder 2, %s22
      // Predicated region
      $region81: #{tpu_custom_call.1} parent=5 // pred_check
        %p753 = pneg %p752
      $region82: #{tpu_custom_call.1} parent=5 // pred_check_branch
        %755 = sbr.rel (%p753) target = $region84
      $region83: #{tpu_custom_call.1} parent=5 // pred_region
        %s756 = ssub.s32 %s22, 2
      $region84: #{tpu_custom_call.1} parent=5 // pred_fallthru
        _
    $region6: #{tpu_custom_call.1} parent=1 // loop_footer
      %s26 = sadd.s32 1, %s22
    $region7: #{tpu_custom_call.1} parent=1 // loop_footer_branch
      %21 = sbr.rel target = $region3
    $region8: #{tpu_custom_call.1} parent=1 // loop_exit
      _
    %757 = vsyncpa [#allocation9], 1
    %s758 = scalar_lea.sflag [#allocation9], 1
    %759 = vsyncpa %s758, 1
    %760 = vsyncpa [#allocation12], 1
    %761 = vsyncpa [#allocation10], 1
    %s762 = scalar_lea.sflag [#allocation10], 1
    %763 = vsyncpa %s762, 1

</llo_original>
